<compile_context>
chip_gen: v6e
topology: v6e:2x2x1
jax: 0.10.0
libtpu: 0.0.40
codegen_flags: <defaults>
</compile_context>

<pallas_src>
import functools

import jax
import jax.numpy as jnp
from jax import lax
from jax.experimental import pallas as pl
from jax.experimental.pallas import tpu as pltpu


def _round_up(x, m):
    return ((x + m - 1) // m) * m


# ----------------------------------------------------------------------------
# Fused kernel:
#   x_ref     : (B_T, L_pad, E)       bf16  embedded tokens (zero padded)
#   wc_ref    : (K_max, E, C_pad)     bf16  per-tap conv weights (all branches)
#   bc_ref    : (1, C_pad)            f32   conv biases (0 on pad channels)
#   valid_ref : (1, C_pad)            i32   # valid conv positions per channel
#   wf_ref    : (C_pad, N_pad)        bf16  folded dense1 @ output_dense
#   bf_ref    : (1, N_pad)            f32   folded bias (-1e30 on pad classes)
#   o_ref     : (B_T, N_pad)          f32   softmax probabilities (lane-dense)
# ----------------------------------------------------------------------------
def _fused_kernel(x_ref, wc_ref, bc_ref, valid_ref, wf_ref, bf_ref, o_ref,
                  *, t_chunk, n_chunks):
    b_t, _, e = x_ref.shape
    k_max, _, c_pad = wc_ref.shape
    valid = valid_ref[...]                                  # (1, C_pad) i32

    def chunk_max(p0):
        # All conv branches for one time chunk: k_max shifted sublane reads,
        # each an MXU dot into the same f32 accumulator.
        acc = jnp.zeros((b_t * t_chunk, c_pad), jnp.float32)
        for t in range(k_max):                              # static, small
            xt = x_ref[:, pl.ds(p0 + t, t_chunk), :].reshape(b_t * t_chunk, e)
            acc = acc + jnp.dot(xt, wc_ref[t],
                                preferred_element_type=jnp.float32)
        conv = acc.reshape(b_t, t_chunk, c_pad)
        # Per-branch time mask (position >= L - k + 1 is invalid).
        pos = p0 + lax.broadcasted_iota(jnp.int32, (t_chunk, c_pad), 0)
        keep = pos < valid                                  # (t_chunk, C_pad)
        conv = jnp.where(keep[None, :, :], conv, -1e30)
        return jnp.max(conv, axis=1)                        # (B_T, C_pad)

    # Running max over time chunks (never materializes (B_T, L, C_pad)).
    pooled = chunk_max(0)
    for c in range(1, n_chunks):                            # static unroll
        pooled = jnp.maximum(pooled, chunk_max(c * t_chunk))

    # Bias + ReLU hoisted past the max-pool (bit-identical: bias is
    # time-invariant and ReLU is monotone).
    pooled = jnp.maximum(pooled + bc_ref[...], 0.0)

    # Folded dense1 -> dropout(identity at inference) -> output_dense.
    # TODO(synk): nn.Dropout training-mode random mask not implemented.
    logits = jnp.dot(pooled.astype(wf_ref.dtype), wf_ref[...],
                     preferred_element_type=jnp.float32) + bf_ref[...]

    # Stable softmax; pad classes carry -1e30 bias -> exp() == 0 exactly.
    m = jnp.max(logits, axis=-1, keepdims=True)
    ez = jnp.exp(logits - m)
    o_ref[...] = ez * pl.reciprocal(jnp.sum(ez, axis=-1, keepdims=True),
                                    approx=True)


# ----------------------------------------------------------------------------
# Tiling heuristic (static shapes only).
# ----------------------------------------------------------------------------
def _pick_tiling(B, L, E, k_max, c_pad, n_out_pad):
    t_chunk = min(256, _round_up(max(L, 8), 8))
    l_out_pad = _round_up(max(L, 8), t_chunk)
    l_pad = _round_up(l_out_pad + k_max - 1, 8)             # taps stay in bounds
    if B <= 8:
        return B, t_chunk, l_out_pad, l_pad

    # Largest batch tile fitting a ~40 MiB VMEM budget (safe on v7x's 64 MiB;
    # v5e/v6e have headroom).  x block is double-buffered bf16.
    budget = 40 * 1024 * 1024
    fixed = (k_max * E * c_pad + c_pad * n_out_pad) * 2 + 2 * c_pad * 4
    b_tile = 256
    while b_tile > 8:
        per_row = (l_pad * E * 2) * 2 + n_out_pad * 4 * 2 + t_chunk * c_pad * 4 * 3
        if fixed + b_tile * per_row <= budget:
            break
        b_tile //= 2
    if b_tile >= B:
        b_tile = _round_up(B, 8)
        if B > 16:                                          # >=2 steps -> both TCs
            b_tile = _round_up(-(-B // 2), 8)
    return b_tile, t_chunk, l_out_pad, l_pad


def fused_cnn_forward(x, wc, bc, valid, wf, bf, *, b_tile, t_chunk, n_chunks):
    b_pad, l_pad, e = x.shape
    k_max, _, c_pad = wc.shape
    n_out_pad = wf.shape[1]
    grid = (b_pad // b_tile,)
    kernel = functools.partial(_fused_kernel, t_chunk=t_chunk, n_chunks=n_chunks)
    return pl.pallas_call(
        kernel,
        out_shape=jax.ShapeDtypeStruct((b_pad, n_out_pad), jnp.float32),
        grid=grid,
        in_specs=[
            pl.BlockSpec((b_tile, l_pad, e), lambda i: (i, 0, 0)),
            pl.BlockSpec((k_max, e, c_pad), lambda i: (0, 0, 0)),
            pl.BlockSpec((1, c_pad), lambda i: (0, 0)),
            pl.BlockSpec((1, c_pad), lambda i: (0, 0)),
            pl.BlockSpec((c_pad, n_out_pad), lambda i: (0, 0)),
            pl.BlockSpec((1, n_out_pad), lambda i: (0, 0)),
        ],
        out_specs=pl.BlockSpec((b_tile, n_out_pad), lambda i: (i, 0)),
        compiler_params=pltpu.CompilerParams(
            dimension_semantics=("parallel",),
            vmem_limit_bytes=48 * 1024 * 1024),
    )(x, wc, bc, valid, wf, bf)


# ----------------------------------------------------------------------------
# Parameter folding (offline, f32): combine all conv branches into one padded
# per-tap weight stack; fold dense1 @ output_dense into a single matrix.
# ----------------------------------------------------------------------------
def prepare_fused_params(params, *, n_grams):
    E = params["embedding"].shape[1]
    k_max = max(n_grams)
    c_list = [w.shape[2] for (w, _) in params["convs"]]
    c_total = sum(c_list)
    c_pad = _round_up(max(c_total, 128), 128)
    classes = params["w2"].shape[1]
    n_out_pad = _round_up(max(classes, 128), 128)

    wc = jnp.zeros((k_max, E, c_pad), jnp.float32)
    bc = jnp.zeros((1, c_pad), jnp.float32)
    k_per_ch = jnp.zeros((c_pad,), jnp.int32)               # 0 == pad channel
    off = 0
    for (w, b), k in zip(params["convs"], n_grams):
        c = w.shape[2]
        wc = wc.at[:k, :, off:off + c].set(w)
        bc = bc.at[:, off:off + c].set(b)
        k_per_ch = k_per_ch.at[off:off + c].set(k)
        off += c

    # Fold dense1 and output_dense (no nonlinearity between them; dropout is
    # identity at inference) -- exact up to fp rounding.
    w_fold = params["w1"] @ params["w2"]                    # (c_total, classes)
    b_fold = params["b1"] @ params["w2"] + params["b2"]     # (1, classes)
    wf = jnp.zeros((c_pad, n_out_pad), jnp.float32).at[:c_total, :classes].set(w_fold)
    bf = jnp.full((1, n_out_pad), -1e30, jnp.float32).at[:, :classes].set(b_fold)

    return {
        "embedding": params["embedding"].astype(jnp.bfloat16),  # frozen table
        "wc": wc.astype(jnp.bfloat16),
        "bc": bc,
        "k_per_ch": k_per_ch,
        "wf": wf.astype(jnp.bfloat16),
        "bf": bf,
    }


# ----------------------------------------------------------------------------
# Full forward pass.  Only the embedding gather + zero-pad are XLA glue; the
# conv/pool/MLP/softmax pipeline is the single fused Pallas kernel above.
# ----------------------------------------------------------------------------
@functools.partial(jax.jit, static_argnames=("k_max", "n_classes"))
def classifier_forward(tokens, fused, *, k_max, n_classes):
    # TODO(synk): the embedding gather could also be fused into the kernel with
    # PrefetchScalarGridSpec + pl.Element row gather; kept in plain JAX here.
    x = fused["embedding"][tokens]                          # (B, L, E) bf16
    B, L, E = x.shape
    c_pad = fused["wc"].shape[2]
    n_out_pad = fused["wf"].shape[1]
    b_tile, t_chunk, l_out_pad, l_pad = _pick_tiling(B, L, E, k_max, c_pad, n_out_pad)
    b_pad = _round_up(B, b_tile)
    x = jnp.pad(x, ((0, b_pad - B), (0, l_pad - L), (0, 0)))

    # Valid conv-output positions per channel: L - k + 1 (0 for pad channels).
    # NOTE: if some k > L the branch is fully masked (-> 0 after ReLU) instead
    # of erroring like PyTorch would in that degenerate configuration.
    k_ch = fused["k_per_ch"]
    valid = jnp.where(k_ch > 0, L - k_ch + 1, 0).astype(jnp.int32)[None, :]

    probs = fused_cnn_forward(x, fused["wc"], fused["bc"], valid,
                              fused["wf"], fused["bf"],
                              b_tile=b_tile, t_chunk=t_chunk,
                              n_chunks=l_out_pad // t_chunk)
    return probs[:B, :n_classes]


# ----------------------------------------------------------------------------
# Pure-JAX reference (mirrors the PyTorch module, f32 everywhere).
# ----------------------------------------------------------------------------
def reference_forward(tokens, params, n_grams):
    x = params["embedding"][tokens].astype(jnp.float32)     # (B, L, E)
    pooled = []
    for (w, b), k in zip(params["convs"], n_grams):
        L_out = x.shape[1] - k + 1
        acc = jnp.zeros((x.shape[0], L_out, w.shape[2]), jnp.float32)
        for t in range(k):
            acc = acc + jnp.einsum("ble,ec->blc", x[:, t:t + L_out, :], w[t])
        acc = jnp.maximum(acc + b, 0.0)
        pooled.append(jnp.max(acc, axis=1))
    feats = jnp.concatenate(pooled, axis=1)
    h = feats @ params["w1"] + params["b1"]
    logits = h @ params["w2"] + params["b2"]
    return jax.nn.softmax(logits, axis=-1)


def init_params(key, *, vocab_size, embed_dim, n_grams, out_channels, hidden, classes):
    keys = jax.random.split(key, 1 + 2 * len(n_grams) + 4)
    params = {}
    params["embedding"] = 0.1 * jax.random.normal(keys[0], (vocab_size, embed_dim), jnp.float32)
    convs = []
    for i, (k, c) in enumerate(zip(n_grams, out_channels)):
        w = 0.1 * jax.random.normal(keys[1 + 2 * i], (k, embed_dim, c), jnp.float32)
        b = 0.1 * jax.random.normal(keys[2 + 2 * i], (1, c), jnp.float32)
        convs.append((w, b))
    params["convs"] = convs
    total_c = sum(out_channels)
    params["w1"] = 0.1 * jax.random.normal(keys[-4], (total_c, hidden), jnp.float32)
    params["b1"] = 0.1 * jax.random.normal(keys[-3], (1, hidden), jnp.float32)
    params["w2"] = 0.1 * jax.random.normal(keys[-2], (hidden, classes), jnp.float32)
    params["b2"] = 0.1 * jax.random.normal(keys[-1], (1, classes), jnp.float32)
    return params


if __name__ == "__main__":
    # Small, forward-consistent shapes.
    B, L = 2, 16                  # batch, sequence length (token ids)
    vocab_size, embed_dim = 50, 32
    n_grams = (2, 3, 4)
    out_channels = (8, 8, 8)      # sum = 24  (padded to 128 lanes internally)
    hidden = 16                   # output_size_dense_layer (folded away)
    classes = 4

    key = jax.random.PRNGKey(0)
    k_params, k_tokens = jax.random.split(key)
    params = init_params(
        k_params,
        vocab_size=vocab_size, embed_dim=embed_dim,
        n_grams=n_grams, out_channels=out_channels,
        hidden=hidden, classes=classes,
    )
    tokens = jax.random.randint(k_tokens, (B, L), 0, vocab_size, dtype=jnp.int32)

    fused = prepare_fused_params(params, n_grams=n_grams)
    k_max = max(n_grams)

    probs = classifier_forward(tokens, fused, k_max=k_max, n_classes=classes)
    probs = jax.block_until_ready(probs)

    ref = reference_forward(tokens, params, n_grams)

    assert probs.shape == (B, classes)
    assert bool(jnp.all(jnp.isfinite(probs)))
    # approx reciprocal in softmax -> sums equal 1 to ~1e-4.
    assert bool(jnp.allclose(jnp.sum(probs, axis=1), 1.0, atol=2e-3))
    assert bool(jnp.allclose(probs, ref, atol=2e-2))   # bf16 operands vs f32 ref
    print("KERNEL_OK")
</pallas_src>

<mosaic_0001>
module attributes {stable_mosaic.version = 11 : i64} {
  func.func @_fused_kernel(%arg0: i32, %arg1: memref<2x24x32xbf16, #tpu.memory_space<vmem>>, %arg2: memref<4x32x128xbf16, #tpu.memory_space<vmem>>, %arg3: memref<1x128xf32, #tpu.memory_space<vmem>>, %arg4: memref<1x128xi32, #tpu.memory_space<vmem>>, %arg5: memref<128x128xbf16, #tpu.memory_space<vmem>>, %arg6: memref<1x128xf32, #tpu.memory_space<vmem>>, %arg7: memref<2x128xf32, #tpu.memory_space<vmem>>) attributes {dimension_semantics = [#tpu.dimension_semantics<parallel>], iteration_bounds = array<i64: 1>, scalar_prefetch = 0 : i64, scratch_operands = 0 : i64, tpu.core_type = #tpu.core_type<tc>, window_params = [{transform_indices = @transform_0, window_bounds = array<i64: 2, 24, 32>}, {pipeline_mode = #tpu.pipeline_mode<synchronous>, transform_indices = @transform_1, window_bounds = array<i64: 4, 32, 128>}, {pipeline_mode = #tpu.pipeline_mode<synchronous>, transform_indices = @transform_2, window_bounds = array<i64: 1, 128>}, {pipeline_mode = #tpu.pipeline_mode<synchronous>, transform_indices = @transform_3, window_bounds = array<i64: 1, 128>}, {pipeline_mode = #tpu.pipeline_mode<synchronous>, transform_indices = @transform_4, window_bounds = array<i64: 128, 128>}, {pipeline_mode = #tpu.pipeline_mode<synchronous>, transform_indices = @transform_5, window_bounds = array<i64: 1, 128>}, {transform_indices = @transform_6, window_bounds = array<i64: 2, 128>}]} {
    %c0 = arith.constant 0 : index
    %c0_0 = arith.constant 0 : index
    %0 = vector.load %arg4[%c0, %c0_0] : memref<1x128xi32, #tpu.memory_space<vmem>>, vector<1x128xi32>
    %cst = arith.constant 0.000000e+00 : f32
    %1 = vector.broadcast %cst : f32 to vector<32x128xf32>
    %c0_1 = arith.constant 0 : index
    %c0_2 = arith.constant 0 : index
    %c0_3 = arith.constant 0 : index
    %2 = vector.load %arg1[%c0_1, %c0_2, %c0_3] : memref<2x24x32xbf16, #tpu.memory_space<vmem>>, vector<2x16x32xbf16>
    %3 = vector.shape_cast %2 : vector<2x16x32xbf16> to vector<32x32xbf16>
    %c0_4 = arith.constant 0 : index
    %c0_5 = arith.constant 0 : index
    %c0_6 = arith.constant 0 : index
    %4 = vector.load %arg2[%c0_4, %c0_5, %c0_6] : memref<4x32x128xbf16, #tpu.memory_space<vmem>>, vector<1x32x128xbf16>
    %5 = vector.shape_cast %4 : vector<1x32x128xbf16> to vector<32x128xbf16>
    %cst_7 = arith.constant dense<0.000000e+00> : vector<32x128xf32>
    %6 = tpu.matmul %3, %5, %cst_7 {dimension_numbers = #tpu.dot_dimension_numbers<[1], [0], [0], [1], [0, 0, 1, 1], [], []>} : vector<32x32xbf16>, vector<32x128xbf16>, vector<32x128xf32> -> vector<32x128xf32>
    %7 = arith.addf %1, %6 : vector<32x128xf32>
    %c0_8 = arith.constant 0 : index
    %c1 = arith.constant 1 : index
    %c0_9 = arith.constant 0 : index
    %8 = vector.load %arg1[%c0_8, %c1, %c0_9] : memref<2x24x32xbf16, #tpu.memory_space<vmem>>, vector<2x16x32xbf16>
    %9 = vector.shape_cast %8 : vector<2x16x32xbf16> to vector<32x32xbf16>
    %c1_10 = arith.constant 1 : index
    %c0_11 = arith.constant 0 : index
    %c0_12 = arith.constant 0 : index
    %10 = vector.load %arg2[%c1_10, %c0_11, %c0_12] : memref<4x32x128xbf16, #tpu.memory_space<vmem>>, vector<1x32x128xbf16>
    %11 = vector.shape_cast %10 : vector<1x32x128xbf16> to vector<32x128xbf16>
    %cst_13 = arith.constant dense<0.000000e+00> : vector<32x128xf32>
    %12 = tpu.matmul %9, %11, %cst_13 {dimension_numbers = #tpu.dot_dimension_numbers<[1], [0], [0], [1], [0, 0, 1, 1], [], []>} : vector<32x32xbf16>, vector<32x128xbf16>, vector<32x128xf32> -> vector<32x128xf32>
    %13 = arith.addf %7, %12 : vector<32x128xf32>
    %c0_14 = arith.constant 0 : index
    %c2 = arith.constant 2 : index
    %c0_15 = arith.constant 0 : index
    %14 = vector.load %arg1[%c0_14, %c2, %c0_15] : memref<2x24x32xbf16, #tpu.memory_space<vmem>>, vector<2x16x32xbf16>
    %15 = vector.shape_cast %14 : vector<2x16x32xbf16> to vector<32x32xbf16>
    %c2_16 = arith.constant 2 : index
    %c0_17 = arith.constant 0 : index
    %c0_18 = arith.constant 0 : index
    %16 = vector.load %arg2[%c2_16, %c0_17, %c0_18] : memref<4x32x128xbf16, #tpu.memory_space<vmem>>, vector<1x32x128xbf16>
    %17 = vector.shape_cast %16 : vector<1x32x128xbf16> to vector<32x128xbf16>
    %cst_19 = arith.constant dense<0.000000e+00> : vector<32x128xf32>
    %18 = tpu.matmul %15, %17, %cst_19 {dimension_numbers = #tpu.dot_dimension_numbers<[1], [0], [0], [1], [0, 0, 1, 1], [], []>} : vector<32x32xbf16>, vector<32x128xbf16>, vector<32x128xf32> -> vector<32x128xf32>
    %19 = arith.addf %13, %18 : vector<32x128xf32>
    %c0_20 = arith.constant 0 : index
    %c3 = arith.constant 3 : index
    %c0_21 = arith.constant 0 : index
    %20 = vector.load %arg1[%c0_20, %c3, %c0_21] : memref<2x24x32xbf16, #tpu.memory_space<vmem>>, vector<2x16x32xbf16>
    %21 = vector.shape_cast %20 : vector<2x16x32xbf16> to vector<32x32xbf16>
    %c3_22 = arith.constant 3 : index
    %c0_23 = arith.constant 0 : index
    %c0_24 = arith.constant 0 : index
    %22 = vector.load %arg2[%c3_22, %c0_23, %c0_24] : memref<4x32x128xbf16, #tpu.memory_space<vmem>>, vector<1x32x128xbf16>
    %23 = vector.shape_cast %22 : vector<1x32x128xbf16> to vector<32x128xbf16>
    %cst_25 = arith.constant dense<0.000000e+00> : vector<32x128xf32>
    %24 = tpu.matmul %21, %23, %cst_25 {dimension_numbers = #tpu.dot_dimension_numbers<[1], [0], [0], [1], [0, 0, 1, 1], [], []>} : vector<32x32xbf16>, vector<32x128xbf16>, vector<32x128xf32> -> vector<32x128xf32>
    %25 = arith.addf %19, %24 : vector<32x128xf32>
    %26 = vector.shape_cast %25 : vector<32x128xf32> to vector<2x16x128xf32>
    %27 = tpu.iota {dimensions = array<i32: 0>} : vector<16x128xi32>
    %c0_i32 = arith.constant 0 : i32
    %28 = vector.broadcast %c0_i32 : i32 to vector<16x128xi32>
    %29 = arith.addi %28, %27 : vector<16x128xi32>
    %30 = vector.broadcast %0 : vector<1x128xi32> to vector<16x128xi32>
    %31 = arith.cmpi slt, %29, %30 : vector<16x128xi32>
    %32 = vector.shape_cast %31 : vector<16x128xi1> to vector<1x16x128xi1>
    %cst_26 = arith.constant -1.000000e+30 : f32
    %33 = vector.shape_cast %32 : vector<1x16x128xi1> to vector<1x16x128xi1>
    %34 = vector.broadcast %33 : vector<1x16x128xi1> to vector<2x16x128xi1>
    %35 = vector.broadcast %cst_26 : f32 to vector<2x16x128xf32>
    %36 = arith.select %34, %26, %35 : vector<2x16x128xi1>, vector<2x16x128xf32>
    %cst_27 = arith.constant dense<0xFF800000> : vector<2x128xf32>
    %37 = vector.multi_reduction <maximumf>, %36, %cst_27 [1] : vector<2x16x128xf32> to vector<2x128xf32>
    %c0_28 = arith.constant 0 : index
    %c0_29 = arith.constant 0 : index
    %38 = vector.load %arg3[%c0_28, %c0_29] : memref<1x128xf32, #tpu.memory_space<vmem>>, vector<1x128xf32>
    %39 = vector.broadcast %38 : vector<1x128xf32> to vector<2x128xf32>
    %40 = arith.addf %37, %39 : vector<2x128xf32>
    %cst_30 = arith.constant 0.000000e+00 : f32
    %41 = vector.broadcast %cst_30 : f32 to vector<2x128xf32>
    %42 = arith.maximumf %40, %41 : vector<2x128xf32>
    %43 = arith.truncf %42 : vector<2x128xf32> to vector<2x128xbf16>
    %c0_31 = arith.constant 0 : index
    %c0_32 = arith.constant 0 : index
    %44 = vector.load %arg5[%c0_31, %c0_32] : memref<128x128xbf16, #tpu.memory_space<vmem>>, vector<128x128xbf16>
    %cst_33 = arith.constant dense<0.000000e+00> : vector<2x128xf32>
    %45 = tpu.matmul %43, %44, %cst_33 {dimension_numbers = #tpu.dot_dimension_numbers<[1], [0], [0], [1], [0, 0, 1, 1], [], []>} : vector<2x128xbf16>, vector<128x128xbf16>, vector<2x128xf32> -> vector<2x128xf32>
    %c0_34 = arith.constant 0 : index
    %c0_35 = arith.constant 0 : index
    %46 = vector.load %arg6[%c0_34, %c0_35] : memref<1x128xf32, #tpu.memory_space<vmem>>, vector<1x128xf32>
    %47 = vector.broadcast %46 : vector<1x128xf32> to vector<2x128xf32>
    %48 = arith.addf %45, %47 : vector<2x128xf32>
    %cst_36 = arith.constant dense<0xFF800000> : vector<2xf32>
    %49 = vector.multi_reduction <maximumf>, %48, %cst_36 [1] : vector<2x128xf32> to vector<2xf32>
    %50 = vector.shape_cast %49 : vector<2xf32> to vector<2x1xf32>
    %51 = vector.broadcast %50 : vector<2x1xf32> to vector<2x128xf32>
    %52 = arith.subf %48, %51 : vector<2x128xf32>
    %53 = math.exp %52 : vector<2x128xf32>
    %cst_37 = arith.constant dense<0.000000e+00> : vector<2xf32>
    %54 = vector.multi_reduction <add>, %53, %cst_37 [1] : vector<2x128xf32> to vector<2xf32>
    %55 = vector.shape_cast %54 : vector<2xf32> to vector<2x1xf32>
    %56 = tpu.reciprocal %55 {approx = true} : vector<2x1xf32> -> vector<2x1xf32>
    %57 = vector.broadcast %56 : vector<2x1xf32> to vector<2x128xf32>
    %58 = arith.mulf %53, %57 : vector<2x128xf32>
    %c0_38 = arith.constant 0 : index
    %c0_39 = arith.constant 0 : index
    %59 = vector.load %arg7[%c0_38, %c0_39] : memref<2x128xf32, #tpu.memory_space<vmem>>, vector<2x128xf32>
    tpu.vector_store %arg7[%c0_38, %c0_39], %58 {strides = array<i32>} : memref<2x128xf32, #tpu.memory_space<vmem>>, vector<2x128xf32>,
    return
  }
  func.func @transform_0(%arg0: i32) -> (i32, i32, i32) {
    %c0_i32 = arith.constant 0 : i32
    %c0_i32_0 = arith.constant 0 : i32
    %c0_i32_1 = arith.constant 0 : i32
    return %arg0, %c0_i32, %c0_i32_0 : i32, i32, i32
  }
  func.func @transform_1(%arg0: i32) -> (i32, i32, i32) {
    %c0_i32 = arith.constant 0 : i32
    %c0_i32_0 = arith.constant 0 : i32
    %c0_i32_1 = arith.constant 0 : i32
    %c0_i32_2 = arith.constant 0 : i32
    return %c0_i32, %c0_i32_0, %c0_i32_1 : i32, i32, i32
  }
  func.func @transform_2(%arg0: i32) -> (i32, i32) {
    %c0_i32 = arith.constant 0 : i32
    %c0_i32_0 = arith.constant 0 : i32
    %c0_i32_1 = arith.constant 0 : i32
    return %c0_i32, %c0_i32_0 : i32, i32
  }
  func.func @transform_3(%arg0: i32) -> (i32, i32) {
    %c0_i32 = arith.constant 0 : i32
    %c0_i32_0 = arith.constant 0 : i32
    %c0_i32_1 = arith.constant 0 : i32
    return %c0_i32, %c0_i32_0 : i32, i32
  }
  func.func @transform_4(%arg0: i32) -> (i32, i32) {
    %c0_i32 = arith.constant 0 : i32
    %c0_i32_0 = arith.constant 0 : i32
    %c0_i32_1 = arith.constant 0 : i32
    return %c0_i32, %c0_i32_0 : i32, i32
  }
  func.func @transform_5(%arg0: i32) -> (i32, i32) {
    %c0_i32 = arith.constant 0 : i32
    %c0_i32_0 = arith.constant 0 : i32
    %c0_i32_1 = arith.constant 0 : i32
    return %c0_i32, %c0_i32_0 : i32, i32
  }
  func.func @transform_6(%arg0: i32) -> (i32, i32) {
    %c0_i32 = arith.constant 0 : i32
    %c0_i32_0 = arith.constant 0 : i32
    return %arg0, %c0_i32 : i32, i32
  }
}

</mosaic_0001>

<llo_original>
// kernel: classifier_forward.1
$region0: #{classifier_forward.1}
  #allocation0 [shape = 'u32[]', space=smem, size = 0x4, offset = 0x4, fixed_abs, tag = 'smem constant byte address 0x4 - core index']
  #allocation1 [shape = 'u32[144,128]{1,0:T(1,128)}', space=vmem, size = 0x12000, scoped, tag = 'internal scratch']
  %s0 = inlined_call_operand.vmem [shape: bf16[2,24,32], index: 0, kind: input, shape index: {}]
  %s1 = inlined_call_operand.vmem [shape: bf16[4,32,128], index: 1, kind: input, shape index: {}]
  %s2 = inlined_call_operand.vmem [shape: f32[1,128], index: 2, kind: input, shape index: {}]
  %s3 = inlined_call_operand.vmem [shape: s32[1,128], index: 3, kind: input, shape index: {}]
  %s4 = inlined_call_operand.vmem [shape: bf16[128,128], index: 4, kind: input, shape index: {}]
  %s5 = inlined_call_operand.vmem [shape: f32[1,128], index: 5, kind: input, shape index: {}]
  %s6 = inlined_call_operand.hbm [shape: f32[2,128], index: 6, kind: output, shape index: {}]
  %s7 = sld [smem:[#allocation0]]
  $region34: #{classifier_forward.1} parent=0
    _
  %s9 = ssub.s32 1, %s7
  %s10 = scalar_select 0, %s9, %s7
  $region1: #{classifier_forward.1} parent=0
    #allocation2 [shape = 'u8[1024]{0}', space=vmem, size = 0x400, scoped, tag = 'output window, operand 0, single buffered']
    #allocation3 [shape = 's32[1]{0}', space=sflag, size = 0x4, scoped, tag = 'scoped memory for classifier_forward.1']
    %11 = vsyncpa [#allocation3], 0
    // Predicated region
    $region2: #{classifier_forward.1} parent=1 // pred_check
      _
    $region3: #{classifier_forward.1} parent=1 // pred_check_branch
      %13 = sbr.rel (0) target = $region5
    $region4: #{classifier_forward.1} parent=1 // pred_region
      _
    $region5: #{classifier_forward.1} parent=1 // pred_fallthru
      _
    // Predicated region
    $region6: #{classifier_forward.1} parent=1 // pred_check
      _
    $region7: #{classifier_forward.1} parent=1 // pred_check_branch
      %15 = sbr.rel (0) target = $region9
    $region8: #{classifier_forward.1} parent=1 // pred_region
      _
    $region9: #{classifier_forward.1} parent=1 // pred_fallthru
      _
    // Predicated region
    $region10: #{classifier_forward.1} parent=1 // pred_check
      _
    $region11: #{classifier_forward.1} parent=1 // pred_check_branch
      %17 = sbr.rel (0) target = $region13
    $region12: #{classifier_forward.1} parent=1 // pred_region
      _
    $region13: #{classifier_forward.1} parent=1 // pred_fallthru
      _
    // Predicated region
    $region14: #{classifier_forward.1} parent=1 // pred_check
      _
    $region15: #{classifier_forward.1} parent=1 // pred_check_branch
      %19 = sbr.rel (0) target = $region17
    $region16: #{classifier_forward.1} parent=1 // pred_region
      _
    $region17: #{classifier_forward.1} parent=1 // pred_fallthru
      _
    // Predicated region
    $region18: #{classifier_forward.1} parent=1 // pred_check
      _
    $region19: #{classifier_forward.1} parent=1 // pred_check_branch
      %21 = sbr.rel (0) target = $region21
    $region20: #{classifier_forward.1} parent=1 // pred_region
      _
    $region21: #{classifier_forward.1} parent=1 // pred_fallthru
      _
    // Predicated region
    $region22: #{classifier_forward.1} parent=1 // pred_check
      _
    $region23: #{classifier_forward.1} parent=1 // pred_check_branch
      %23 = sbr.rel (0) target = $region25
    $region24: #{classifier_forward.1} parent=1 // pred_region
      _
    $region25: #{classifier_forward.1} parent=1 // pred_fallthru
      _
    %v25 = vld [vmem:[%s3] sm:$0x1]
    %v26 = vld [vmem:[%s0] sm:$0xf]
    %v27 = vld [vmem:[%s0 + $0x4] sm:$0xf]
    %v28 = vld [vmem:[%s0 + $0xc] sm:$0xf]
    %v29 = vld [vmem:[%s0 + $0x10] sm:$0xf]
    %v30 = vld [vmem:[%s1] sm:$0xf]
    %v31 = vld [vmem:[%s1 + $0x4] sm:$0xf]
    %v32 = vld [vmem:[%s1 + $0x8] sm:$0xf]
    %v33 = vld [vmem:[%s1 + $0xc] sm:$0xf]
    %v34 = vld [vmem:[%s0 + $0x8] sm:$0x1]
    %v35 = vld [vmem:[%s0 + $0x14] sm:$0x1]
    %vm36 = vsmask.f32 3328
    %vm37 = vsmask.f32 7440
    %vm38 = vmor %vm36, %vm37
    %v40 = vshrl.u32 %v26, 16
    %v42 = vrot.slane %v40, 4
    %v43 = vshll.u32 %v26, 16
    %v45 = vrot.slane %v43, 5
    %v46 = vor.u32 %v42, %v45
    %v47 = vrot.slane %v46, 4
    %v49 = vshll.u32 %v27, 16
    %v51 = vrot.slane %v49, 5
    %v52 = vsel %vm38, %v47, %v51
    %v53 = vshrl.u32 %v27, 16
    %v55 = vrot.slane %v53, 4
    %v56 = vor.u32 %v55, %v51
    %v57 = vrot.slane %v56, 4
    %v59 = vshll.u32 %v34, 16
    %v61 = vrot.slane %v59, 5
    %v62 = vsel %vm38, %v57, %v61
    %v64 = vshrl.u32 %v28, 16
    %v66 = vrot.slane %v64, 4
    %v67 = vshll.u32 %v28, 16
    %v69 = vrot.slane %v67, 5
    %v70 = vor.u32 %v66, %v69
    %v71 = vrot.slane %v70, 4
    %v73 = vshll.u32 %v29, 16
    %v75 = vrot.slane %v73, 5
    %v76 = vsel %vm38, %v71, %v75
    %v77 = vshrl.u32 %v29, 16
    %v79 = vrot.slane %v77, 4
    %v80 = vor.u32 %v79, %v75
    %v81 = vrot.slane %v80, 4
    %v83 = vshll.u32 %v35, 16
    %v85 = vrot.slane %v83, 5
    %v86 = vsel %vm38, %v81, %v85
    %s87 = scalar_lea.vmem %s1, 16
    %v88 = vld [vmem:[%s87] sm:$0xf]
    %v89 = vld [vmem:[%s87 + $0x4] sm:$0xf]
    %v90 = vld [vmem:[%s87 + $0x8] sm:$0xf]
    %v91 = vld [vmem:[%s87 + $0xc] sm:$0xf]
    %v92 = vunpack.c.l.b16 %v52
    %v93 = vunpack.c.l.b16 %v62
    %v94 = vunpack.c.l.b16 %v76
    %v95 = vunpack.c.l.b16 %v86
    %v96 = vpack.c.b16 %v93, %v92
    %v97 = vpack.c.b16 %v95, %v94
    %v102 = vunpack.c.l.b16 %v88
    %v103 = vunpack.c.l.b16 %v89
    %v104 = vunpack.c.l.b16 %v90
    %v105 = vunpack.c.l.b16 %v91
    %v106 = vpack.c.b16 %v103, %v102
    %v107 = vpack.c.b16 %v105, %v104
    %vm110 = vcmask 261120
    %v112 = vsel %vm110, %v96, 0
    %v115 = vsel %vm110, %v97, 0
    %117 = vmatprep.subr.bf16.mxu0 0
    %118 = vmatpush1.bf16.msra.mxu0 0
    %119 = vmatprep.subr.bf16.mxu0 0
    %120 = vmatpush1.bf16.msra.mxu0 0
    %121 = vmatprep.subr.bf16.mxu0 0
    %122 = vmatpush1.bf16.msra.mxu0 0
    %123 = vmatprep.subr.bf16.mxu0 0
    %124 = vmatpush1.bf16.msra.mxu0 0
    %125 = vmatprep.subr.bf16.mxu0 0
    %126 = vmatpush1.bf16.msra.mxu0 0
    %127 = vmatprep.subr.bf16.mxu0 0
    %128 = vmatpush1.bf16.msra.mxu0 0
    %129 = vmatprep.subr.bf16.mxu0 0
    %130 = vmatpush1.bf16.msra.mxu0 %v107
    %131 = vmatprep.subr.bf16.mxu0 0
    %132 = vmatpush1.bf16.msra.mxu0 %v106
    %133 = vmatprep.subr.bf16.mxu0 0
    %134 = vmatpush2.bf16.msra.mxu0 0
    %135 = vmatprep.subr.bf16.mxu0 0
    %136 = vmatpush2.bf16.msra.mxu0 0
    %137 = vmatprep.subr.bf16.mxu0 0
    %138 = vmatpush2.bf16.msra.mxu0 0
    %139 = vmatprep.subr.bf16.mxu0 0
    %140 = vmatpush2.bf16.msra.mxu0 0
    %141 = vmatprep.subr.bf16.mxu0 0
    %142 = vmatpush2.bf16.msra.mxu0 0
    %143 = vmatprep.subr.bf16.mxu0 0
    %144 = vmatpush2.bf16.msra.mxu0 0
    %145 = vmatprep.subr.bf16.mxu0 0
    %146 = vmatpush2.bf16.msra.mxu0 0
    %147 = vmatprep.subr.bf16.mxu0 0
    %148 = vmatpush2.bf16.msra.mxu0 0
    %149 = vmatprep.mubr.bf16.mxu0 0
    %150 = vmatmul.mubr.bf16.gmra.mxu0 %v112
    %v151 = vpop.f32.mrf.mxu0
    %v152 = vadd.f32 0.0, %v151
    %v153 = vpop.f32.mrf.mxu0
    %v154 = vpop.f32.mrf.mxu0
    %v155 = vadd.f32 0.0, %v154
    %v156 = vpop.f32.mrf.mxu0
    %157 = vmatprep.mubr.bf16.mxu0 0
    %158 = vmatmul.mubr.bf16.gmra.mxu0 %v115
    %v159 = vpop.f32.mrf.mxu0
    %v160 = vadd.f32 0.0, %v159
    %v161 = vpop.f32.mrf.mxu0
    %v162 = vpop.f32.mrf.mxu0
    %v163 = vadd.f32 0.0, %v162
    %v164 = vpop.f32.mrf.mxu0
    %165 = vdwg.mxu0
    %v170 = vunpack.c.l.b16 %v26
    %v171 = vunpack.c.l.b16 %v27
    %v172 = vunpack.c.l.b16 %v28
    %v173 = vunpack.c.l.b16 %v29
    %v174 = vpack.c.b16 %v171, %v170
    %v175 = vpack.c.b16 %v173, %v172
    %v180 = vunpack.c.l.b16 %v30
    %v181 = vunpack.c.l.b16 %v31
    %v182 = vunpack.c.l.b16 %v32
    %v183 = vunpack.c.l.b16 %v33
    %v184 = vpack.c.b16 %v181, %v180
    %v185 = vpack.c.b16 %v183, %v182
    %v189 = vsel %vm110, %v174, 0
    %v192 = vsel %vm110, %v175, 0
    %194 = vmatprep.subr.bf16.mxu0 0
    %195 = vmatpush1.bf16.msra.mxu0 0
    %196 = vmatprep.subr.bf16.mxu0 0
    %197 = vmatpush1.bf16.msra.mxu0 0
    %198 = vmatprep.subr.bf16.mxu0 0
    %199 = vmatpush1.bf16.msra.mxu0 0
    %200 = vmatprep.subr.bf16.mxu0 0
    %201 = vmatpush1.bf16.msra.mxu0 0
    %202 = vmatprep.subr.bf16.mxu0 0
    %203 = vmatpush1.bf16.msra.mxu0 0
    %204 = vmatprep.subr.bf16.mxu0 0
    %205 = vmatpush1.bf16.msra.mxu0 0
    %206 = vmatprep.subr.bf16.mxu0 0
    %207 = vmatpush1.bf16.msra.mxu0 %v185
    %208 = vmatprep.subr.bf16.mxu0 0
    %209 = vmatpush1.bf16.msra.mxu0 %v184
    %210 = vmatprep.subr.bf16.mxu0 0
    %211 = vmatpush2.bf16.msra.mxu0 0
    %212 = vmatprep.subr.bf16.mxu0 0
    %213 = vmatpush2.bf16.msra.mxu0 0
    %214 = vmatprep.subr.bf16.mxu0 0
    %215 = vmatpush2.bf16.msra.mxu0 0
    %216 = vmatprep.subr.bf16.mxu0 0
    %217 = vmatpush2.bf16.msra.mxu0 0
    %218 = vmatprep.subr.bf16.mxu0 0
    %219 = vmatpush2.bf16.msra.mxu0 0
    %220 = vmatprep.subr.bf16.mxu0 0
    %221 = vmatpush2.bf16.msra.mxu0 0
    %222 = vmatprep.subr.bf16.mxu0 0
    %223 = vmatpush2.bf16.msra.mxu0 0
    %224 = vmatprep.subr.bf16.mxu0 0
    %225 = vmatpush2.bf16.msra.mxu0 0
    %226 = vmatprep.mubr.bf16.mxu0 0
    %227 = vmatmul.mubr.bf16.gmra.mxu0 %v189
    %v228 = vpop.f32.mrf.mxu0
    %v229 = vadd.f32 %v152, %v228
    %v230 = vpop.f32.mrf.mxu0
    %v231 = vpop.f32.mrf.mxu0
    %v232 = vadd.f32 %v155, %v231
    %v233 = vpop.f32.mrf.mxu0
    %234 = vmatprep.mubr.bf16.mxu0 0
    %235 = vmatmul.mubr.bf16.gmra.mxu0 %v192
    %v236 = vpop.f32.mrf.mxu0
    %v237 = vadd.f32 %v160, %v236
    %v238 = vpop.f32.mrf.mxu0
    %v239 = vpop.f32.mrf.mxu0
    %v240 = vadd.f32 %v163, %v239
    %v241 = vpop.f32.mrf.mxu0
    %242 = vdwg.mxu0
    %v243 = vld [vmem:[%s0] sm:$0xe]
    %v244 = vld [vmem:[%s0 + $0xc] sm:$0xe]
    %vm249 = vcmask 1042432
    %vm250 = vcmask 1046532
    %vm251 = vmor %vm249, %vm250
    %v252 = vrot.slane %v243, 5
    %v253 = vrot.slane %v252, 4
    %v254 = vrot.slane %v27, 5
    %v255 = vsel %vm251, %v253, %v254
    %v256 = vrot.slane %v254, 4
    %v257 = vrot.slane %v34, 5
    %v258 = vsel %vm251, %v256, %v257
    %v259 = vrot.slane %v244, 5
    %v260 = vrot.slane %v259, 4
    %v261 = vrot.slane %v29, 5
    %v262 = vsel %vm251, %v260, %v261
    %v263 = vrot.slane %v261, 4
    %v264 = vrot.slane %v35, 5
    %v265 = vsel %vm251, %v263, %v264
    %s266 = scalar_lea.vmem %s1, 32
    %v267 = vld [vmem:[%s266] sm:$0xf]
    %v268 = vld [vmem:[%s266 + $0x4] sm:$0xf]
    %v269 = vld [vmem:[%s266 + $0x8] sm:$0xf]
    %v270 = vld [vmem:[%s266 + $0xc] sm:$0xf]
    %v271 = vunpack.c.l.b16 %v255
    %v272 = vunpack.c.l.b16 %v258
    %v273 = vunpack.c.l.b16 %v262
    %v274 = vunpack.c.l.b16 %v265
    %v275 = vpack.c.b16 %v272, %v271
    %v276 = vpack.c.b16 %v274, %v273
    %v281 = vunpack.c.l.b16 %v267
    %v282 = vunpack.c.l.b16 %v268
    %v283 = vunpack.c.l.b16 %v269
    %v284 = vunpack.c.l.b16 %v270
    %v285 = vpack.c.b16 %v282, %v281
    %v286 = vpack.c.b16 %v284, %v283
    %v290 = vsel %vm110, %v275, 0
    %v293 = vsel %vm110, %v276, 0
    %295 = vmatprep.subr.bf16.mxu0 0
    %296 = vmatpush1.bf16.msra.mxu0 0
    %297 = vmatprep.subr.bf16.mxu0 0
    %298 = vmatpush1.bf16.msra.mxu0 0
    %299 = vmatprep.subr.bf16.mxu0 0
    %300 = vmatpush1.bf16.msra.mxu0 0
    %301 = vmatprep.subr.bf16.mxu0 0
    %302 = vmatpush1.bf16.msra.mxu0 0
    %303 = vmatprep.subr.bf16.mxu0 0
    %304 = vmatpush1.bf16.msra.mxu0 0
    %305 = vmatprep.subr.bf16.mxu0 0
    %306 = vmatpush1.bf16.msra.mxu0 0
    %307 = vmatprep.subr.bf16.mxu0 0
    %308 = vmatpush1.bf16.msra.mxu0 %v286
    %309 = vmatprep.subr.bf16.mxu0 0
    %310 = vmatpush1.bf16.msra.mxu0 %v285
    %311 = vmatprep.subr.bf16.mxu0 0
    %312 = vmatpush2.bf16.msra.mxu0 0
    %313 = vmatprep.subr.bf16.mxu0 0
    %314 = vmatpush2.bf16.msra.mxu0 0
    %315 = vmatprep.subr.bf16.mxu0 0
    %316 = vmatpush2.bf16.msra.mxu0 0
    %317 = vmatprep.subr.bf16.mxu0 0
    %318 = vmatpush2.bf16.msra.mxu0 0
    %319 = vmatprep.subr.bf16.mxu0 0
    %320 = vmatpush2.bf16.msra.mxu0 0
    %321 = vmatprep.subr.bf16.mxu0 0
    %322 = vmatpush2.bf16.msra.mxu0 0
    %323 = vmatprep.subr.bf16.mxu0 0
    %324 = vmatpush2.bf16.msra.mxu0 0
    %325 = vmatprep.subr.bf16.mxu0 0
    %326 = vmatpush2.bf16.msra.mxu0 0
    %327 = vmatprep.mubr.bf16.mxu0 0
    %328 = vmatmul.mubr.bf16.gmra.mxu0 %v290
    %v329 = vpop.f32.mrf.mxu0
    %v330 = vadd.f32 0.0, %v329
    %v331 = vpop.f32.mrf.mxu0
    %v332 = vpop.f32.mrf.mxu0
    %v333 = vadd.f32 0.0, %v332
    %v334 = vpop.f32.mrf.mxu0
    %335 = vmatprep.mubr.bf16.mxu0 0
    %336 = vmatmul.mubr.bf16.gmra.mxu0 %v293
    %v337 = vpop.f32.mrf.mxu0
    %v338 = vadd.f32 0.0, %v337
    %v339 = vpop.f32.mrf.mxu0
    %v340 = vpop.f32.mrf.mxu0
    %v341 = vadd.f32 0.0, %v340
    %v342 = vpop.f32.mrf.mxu0
    %343 = vdwg.mxu0
    %v344 = vadd.f32 %v229, %v330
    %v345 = vadd.f32 %v232, %v333
    %v346 = vadd.f32 %v237, %v338
    %v347 = vadd.f32 %v240, %v341
    %v348 = vld [vmem:[%s0 + $0x8] sm:$0x3]
    %v349 = vld [vmem:[%s0 + $0x14] sm:$0x3]
    %vm350 = vsmask.f32 2304
    %vm351 = vsmask.f32 6416
    %vm352 = vmor %vm350, %vm351
    %v354 = vshrl.u32 %v243, 16
    %v356 = vrot.slane %v354, 5
    %v357 = vshll.u32 %v243, 16
    %v359 = vrot.slane %v357, 6
    %v360 = vor.u32 %v356, %v359
    %v361 = vrot.slane %v360, 4
    %v362 = vrot.slane %v53, 5
    %v363 = vrot.slane %v49, 6
    %v364 = vor.u32 %v362, %v363
    %v365 = vsel %vm352, %v361, %v364
    %v366 = vrot.slane %v364, 4
    %v368 = vshrl.u32 %v348, 16
    %v370 = vrot.slane %v368, 5
    %v371 = vshll.u32 %v348, 16
    %v373 = vrot.slane %v371, 6
    %v374 = vor.u32 %v370, %v373
    %v375 = vsel %vm352, %v366, %v374
    %v377 = vshrl.u32 %v244, 16
    %v379 = vrot.slane %v377, 5
    %v380 = vshll.u32 %v244, 16
    %v382 = vrot.slane %v380, 6
    %v383 = vor.u32 %v379, %v382
    %v384 = vrot.slane %v383, 4
    %v385 = vrot.slane %v77, 5
    %v386 = vrot.slane %v73, 6
    %v387 = vor.u32 %v385, %v386
    %v388 = vsel %vm352, %v384, %v387
    %v389 = vrot.slane %v387, 4
    %v391 = vshrl.u32 %v349, 16
    %v393 = vrot.slane %v391, 5
    %v394 = vshll.u32 %v349, 16
    %v396 = vrot.slane %v394, 6
    %v397 = vor.u32 %v393, %v396
    %v398 = vsel %vm352, %v389, %v397
    %s399 = scalar_lea.vmem %s1, 48
    %v400 = vld [vmem:[%s399] sm:$0xf]
    %v401 = vld [vmem:[%s399 + $0x4] sm:$0xf]
    %v402 = vld [vmem:[%s399 + $0x8] sm:$0xf]
    %v403 = vld [vmem:[%s399 + $0xc] sm:$0xf]
    %v404 = vunpack.c.l.b16 %v365
    %v405 = vunpack.c.l.b16 %v375
    %v406 = vunpack.c.l.b16 %v388
    %v407 = vunpack.c.l.b16 %v398
    %v408 = vpack.c.b16 %v405, %v404
    %v409 = vpack.c.b16 %v407, %v406
    %v414 = vunpack.c.l.b16 %v400
    %v415 = vunpack.c.l.b16 %v401
    %v416 = vunpack.c.l.b16 %v402
    %v417 = vunpack.c.l.b16 %v403
    %v418 = vpack.c.b16 %v415, %v414
    %v419 = vpack.c.b16 %v417, %v416
    %v423 = vsel %vm110, %v408, 0
    %v426 = vsel %vm110, %v409, 0
    %428 = vmatprep.subr.bf16.mxu0 0
    %429 = vmatpush1.bf16.msra.mxu0 0
    %430 = vmatprep.subr.bf16.mxu0 0
    %431 = vmatpush1.bf16.msra.mxu0 0
    %432 = vmatprep.subr.bf16.mxu0 0
    %433 = vmatpush1.bf16.msra.mxu0 0
    %434 = vmatprep.subr.bf16.mxu0 0
    %435 = vmatpush1.bf16.msra.mxu0 0
    %436 = vmatprep.subr.bf16.mxu0 0
    %437 = vmatpush1.bf16.msra.mxu0 0
    %438 = vmatprep.subr.bf16.mxu0 0
    %439 = vmatpush1.bf16.msra.mxu0 0
    %440 = vmatprep.subr.bf16.mxu0 0
    %441 = vmatpush1.bf16.msra.mxu0 %v419
    %442 = vmatprep.subr.bf16.mxu0 0
    %443 = vmatpush1.bf16.msra.mxu0 %v418
    %444 = vmatprep.subr.bf16.mxu0 0
    %445 = vmatpush2.bf16.msra.mxu0 0
    %446 = vmatprep.subr.bf16.mxu0 0
    %447 = vmatpush2.bf16.msra.mxu0 0
    %448 = vmatprep.subr.bf16.mxu0 0
    %449 = vmatpush2.bf16.msra.mxu0 0
    %450 = vmatprep.subr.bf16.mxu0 0
    %451 = vmatpush2.bf16.msra.mxu0 0
    %452 = vmatprep.subr.bf16.mxu0 0
    %453 = vmatpush2.bf16.msra.mxu0 0
    %454 = vmatprep.subr.bf16.mxu0 0
    %455 = vmatpush2.bf16.msra.mxu0 0
    %456 = vmatprep.subr.bf16.mxu0 0
    %457 = vmatpush2.bf16.msra.mxu0 0
    %458 = vmatprep.subr.bf16.mxu0 0
    %459 = vmatpush2.bf16.msra.mxu0 0
    %460 = vmatprep.mubr.bf16.mxu0 0
    %461 = vmatmul.mubr.bf16.gmra.mxu0 %v423
    %v462 = vpop.f32.mrf.mxu0
    %v463 = vadd.f32 0.0, %v462
    %v464 = vpop.f32.mrf.mxu0
    %v465 = vpop.f32.mrf.mxu0
    %v466 = vadd.f32 0.0, %v465
    %v467 = vpop.f32.mrf.mxu0
    %468 = vmatprep.mubr.bf16.mxu0 0
    %469 = vmatmul.mubr.bf16.gmra.mxu0 %v426
    %v470 = vpop.f32.mrf.mxu0
    %v471 = vadd.f32 0.0, %v470
    %v472 = vpop.f32.mrf.mxu0
    %v473 = vpop.f32.mrf.mxu0
    %v474 = vadd.f32 0.0, %v473
    %v475 = vpop.f32.mrf.mxu0
    %476 = vdwg.mxu0
    %v477 = vadd.f32 %v344, %v463
    %v478 = vadd.f32 %v345, %v466
    %v479 = vadd.f32 %v346, %v471
    %v480 = vadd.f32 %v347, %v474
    %v481 = vlaneseq
    %v482 = vshrl.u32 %v481, 7
    %v483 = vadd.s32 %v482, 8
    %v484 = vlaneseq
    %v485 = vshrl.u32 %v484, 7
    %v486 = vsub.s32 0, %v485
    %v487 = vrot.slane %v25, %v486
    %vm488 = vcmp.lt.s32.totalorder %v482, %v487
    %vm489 = vcmp.lt.s32.totalorder %v483, %v487
    %v490 = vsel %vm488, 1, 0
    %v491 = vsel %vm489, 1, 0
    %vm492 = vcmp.eq.s32.totalorder %v490, 1
    %vm493 = vcmp.eq.s32.totalorder %v491, 1
    %v494 = vsel %vm492, %v477, -1e+30
    %v495 = vsel %vm493, %v478, -1e+30
    %v496 = vsel %vm492, %v479, -1e+30
    %v497 = vsel %vm493, %v480, -1e+30
    %v498 = vmax.f32 %v494, %v495
    %v499 = vrot.slane %v498, 4
    %v500 = vmax.f32 %v498, %v499
    %v501 = vrot.slane %v500, 2
    %v502 = vmax.f32 %v500, %v501
    %v503 = vrot.slane %v502, 1
    %v504 = vmax.f32 %v502, %v503
    %v505 = vmax.f32 %v496, %v497
    %v506 = vrot.slane %v505, 4
    %v507 = vmax.f32 %v505, %v506
    %v508 = vrot.slane %v507, 2
    %v509 = vmax.f32 %v507, %v508
    %v510 = vrot.slane %v509, 1
    %v511 = vmax.f32 %v509, %v510
    %v512 = vld [vmem:[%s2] sm:$0x1]
    %v514 = vlaneseq
    %v515 = vshrl.u32 %v514, 7
    %v516 = vsub.s32 0, %v515
    %v517 = vrot.slane %v512, %v516
    %v519 = vadd.f32 %v504, %v517
    %v520 = vadd.f32 %v511, %v517
    %v521 = vmax.f32 %v519, 0.0
    %v522 = vmax.f32 %v520, 0.0
    %v523 = vpack.c.bf16 %v521, %v521
    %v524 = vpack.c.bf16 %v522, %v522
    %v525 = vld [vmem:[%s4] sm:$0xf]
    %v526 = vld [vmem:[%s4 + $0x4] sm:$0xf]
    %v527 = vld [vmem:[%s4 + $0x8] sm:$0xf]
    %v528 = vld [vmem:[%s4 + $0xc] sm:$0xf]
    %v529 = vld [vmem:[%s4 + $0x10] sm:$0xf]
    %v530 = vld [vmem:[%s4 + $0x14] sm:$0xf]
    %v531 = vld [vmem:[%s4 + $0x18] sm:$0xf]
    %v532 = vld [vmem:[%s4 + $0x1c] sm:$0xf]
    %v533 = vld [vmem:[%s4 + $0x20] sm:$0xf]
    %v534 = vld [vmem:[%s4 + $0x24] sm:$0xf]
    %v535 = vld [vmem:[%s4 + $0x28] sm:$0xf]
    %v536 = vld [vmem:[%s4 + $0x2c] sm:$0xf]
    %v537 = vld [vmem:[%s4 + $0x30] sm:$0xf]
    %v538 = vld [vmem:[%s4 + $0x34] sm:$0xf]
    %v539 = vld [vmem:[%s4 + $0x38] sm:$0xf]
    %v540 = vld [vmem:[%s4 + $0x3c] sm:$0xf]
    %v541 = vld [vmem:[%s5] sm:$0x1]
    %v543 = vlaneseq
    %v544 = vshrl.u32 %v543, 7
    %v545 = vsub.s32 0, %v544
    %v546 = vrot.slane %v541, %v545
    %v550 = vunpack.c.l.b16 %v523
    %v551 = vunpack.c.l.b16 %v524
    %v552 = vrot.slane %v551, 7
    %vm553 = vcmask 1041409
    %v554 = vsel %vm553, %v552, %v550
    %v555 = vpack.c.b16 %v554, %v554
    %v573 = vunpack.c.l.b16 %v525
    %v574 = vunpack.c.l.b16 %v526
    %v575 = vunpack.c.l.b16 %v527
    %v576 = vunpack.c.l.b16 %v528
    %v577 = vunpack.c.l.b16 %v529
    %v578 = vunpack.c.l.b16 %v530
    %v579 = vunpack.c.l.b16 %v531
    %v580 = vunpack.c.l.b16 %v532
    %v581 = vunpack.c.l.b16 %v533
    %v582 = vunpack.c.l.b16 %v534
    %v583 = vunpack.c.l.b16 %v535
    %v584 = vunpack.c.l.b16 %v536
    %v585 = vunpack.c.l.b16 %v537
    %v586 = vunpack.c.l.b16 %v538
    %v587 = vunpack.c.l.b16 %v539
    %v588 = vunpack.c.l.b16 %v540
    %v589 = vpack.c.b16 %v574, %v573
    %v590 = vpack.c.b16 %v576, %v575
    %v591 = vpack.c.b16 %v578, %v577
    %v592 = vpack.c.b16 %v580, %v579
    %v593 = vpack.c.b16 %v582, %v581
    %v594 = vpack.c.b16 %v584, %v583
    %v595 = vpack.c.b16 %v586, %v585
    %v596 = vpack.c.b16 %v588, %v587
    %605 = vmatprep.subr.bf16.mxu0 0
    %606 = vmatpush1.bf16.msra.mxu0 %v596
    %607 = vmatprep.subr.bf16.mxu0 0
    %608 = vmatpush1.bf16.msra.mxu0 %v595
    %609 = vmatprep.subr.bf16.mxu0 0
    %610 = vmatpush1.bf16.msra.mxu0 %v594
    %611 = vmatprep.subr.bf16.mxu0 0
    %612 = vmatpush1.bf16.msra.mxu0 %v593
    %613 = vmatprep.subr.bf16.mxu0 0
    %614 = vmatpush1.bf16.msra.mxu0 %v592
    %615 = vmatprep.subr.bf16.mxu0 0
    %616 = vmatpush1.bf16.msra.mxu0 %v591
    %617 = vmatprep.subr.bf16.mxu0 0
    %618 = vmatpush1.bf16.msra.mxu0 %v590
    %619 = vmatprep.subr.bf16.mxu0 0
    %620 = vmatpush1.bf16.msra.mxu0 %v589
    %621 = vmatprep.subr.bf16.mxu0 0
    %622 = vmatpush2.bf16.msra.mxu0 0
    %623 = vmatprep.subr.bf16.mxu0 0
    %624 = vmatpush2.bf16.msra.mxu0 0
    %625 = vmatprep.subr.bf16.mxu0 0
    %626 = vmatpush2.bf16.msra.mxu0 0
    %627 = vmatprep.subr.bf16.mxu0 0
    %628 = vmatpush2.bf16.msra.mxu0 0
    %629 = vmatprep.subr.bf16.mxu0 0
    %630 = vmatpush2.bf16.msra.mxu0 0
    %631 = vmatprep.subr.bf16.mxu0 0
    %632 = vmatpush2.bf16.msra.mxu0 0
    %633 = vmatprep.subr.bf16.mxu0 0
    %634 = vmatpush2.bf16.msra.mxu0 0
    %635 = vmatprep.subr.bf16.mxu0 0
    %636 = vmatpush2.bf16.msra.mxu0 0
    %637 = vmatprep.mubr.bf16.mxu0 0
    %638 = vmatmul.mubr.bf16.gmra.mxu0 %v555
    %v639 = vpop.f32.mrf.mxu0
    %v640 = vadd.f32 %v546, %v639
    %v641 = vpop.f32.mrf.mxu0
    %v642 = vpop.f32.mrf.mxu0
    %v643 = vpop.f32.mrf.mxu0
    %644 = vdwg.mxu0
    %vm645 = vcmask 1041408
    %v646 = vsel %vm645, %v640, -inf
    %647 = vmax.xlane.f32.xlu0 %v646
    %v648 = vpop.xlane.xlu0 %647
    %v649 = vsub.f32 %v640, %v648
    %v650 = vmul.f32 %v649, 1.442695
    %v651 = vpow.pop %v650
    %v652 = vsel %vm645, %v651, 0.0
    %653 = vadd.xlane.f32.xlu0 %v652
    %v654 = vpop.xlane.xlu0 %653
    %v655 = vrcp.pop %v654
    %v656 = vmul.f32 %v651, %v655
    %657 = vst [vmem:[#allocation2] sm:$0x3] %v656
    // Predicated region
    $region26: #{classifier_forward.1} parent=1 // pred_check
      _
    $region27: #{classifier_forward.1} parent=1 // pred_check_branch
      %659 = sbr.rel (0) target = $region29
    $region28: #{classifier_forward.1} parent=1 // pred_region
      %s661 = ssub.s32 32, 32
      %662 = vsyncadd [#allocation3], %s661
      %s664 = sshll.u32 [#allocation2], 4
      %s665 = int_to_ptr.vmem [resolvable:$true] %s664
      %667 = dma.vmem_to_hbm [thread:$0]  %s665, 32, %s6, [#allocation3]
    $region29: #{classifier_forward.1} parent=1 // pred_fallthru
      _
    // Predicated region
    $region30: #{classifier_forward.1} parent=1 // pred_check
      _
    $region31: #{classifier_forward.1} parent=1 // pred_check_branch
      %669 = sbr.rel (0) target = $region33
    $region32: #{classifier_forward.1} parent=1 // pred_region
      %670 = dma.done [#allocation3], 32
    $region33: #{classifier_forward.1} parent=1 // pred_fallthru
      _
    %671 = vsyncpa [#allocation3], 1

</llo_original>
